<compile_context>
chip_gen: v5e
topology: v5e:2x2
jax: 0.10.0
libtpu: 0.0.40
codegen_flags: <defaults>
</compile_context>

<pallas_src>
import numpy as np
import jax
import jax.numpy as jnp
from jax.experimental import pallas as pl
from jax.experimental.pallas import tpu as pltpu


# ----------------------------- Pallas kernel --------------------------------

def ei_dense_kernel(x_ref, w_ref, b_ref, o_ref, acc_ref):
    # x_ref  : (TB, TK)      bf16 batch/contraction tile
    # w_ref  : (TK, NE_PAD)  bf16 weight tile (pre-transposed W.T)
    # b_ref  : (1, NE_PAD)   f32 bias row
    # o_ref  : (TB, NE_PAD)  f32 output tile (resident across the K axis)
    # acc_ref: (TB, NE_PAD)  f32 accumulator scratch
    k = pl.program_id(1)

    @pl.when(k == 0)
    def _():
        acc_ref[...] = jnp.zeros_like(acc_ref)

    acc_ref[...] += jnp.dot(x_ref[...], w_ref[...],
                            preferred_element_type=jnp.float32)

    @pl.when(k == pl.num_programs(1) - 1)
    def _():
        # nonlinearity is None in the reference default -> identity
        o_ref[...] = (acc_ref[...] + b_ref[...]).astype(o_ref.dtype)


# ------------------------------ wrapper --------------------------------------

def _round_up(v, m):
    return ((v + m - 1) // m) * m


def ei_dense_forward(x, Wex, Wix, Wei, bias, *, tile_b=256, tile_k=512):
    """x: (B, K) f32; Wex: (ne, K); Wix: (ni, K); Wei: (ne, ni); bias: (ne, 1)."""
    B, K = x.shape
    ne = Wex.shape[0]

    # Effective weight of the EiDense layer (one-time parameter combine).
    W = Wex - Wei @ Wix                 # (ne, K) f32
    Wt = jnp.transpose(W)               # (K, ne) -> canonical (M,K)x(K,N) matmul

    # --- pad to MXU / lane friendly shapes (zero padding is exact) ---
    ne_pad = _round_up(ne, 128)                      # lane-dense output stores
    tile_b_eff = min(tile_b, _round_up(B, 128))      # MXU-saturating batch tile
    B_pad = _round_up(B, tile_b_eff)
    if K <= 2 * tile_k:                              # small K: single K step
        tile_k_eff, K_pad = K, K
    else:                                            # large K: tile the reduction
        tile_k_eff = tile_k
        K_pad = _round_up(K, tile_k_eff)

    x_p = jnp.zeros((B_pad, K_pad), jnp.bfloat16).at[:B, :K].set(
        x.astype(jnp.bfloat16))
    w_p = jnp.zeros((K_pad, ne_pad), jnp.bfloat16).at[:K, :ne].set(
        Wt.astype(jnp.bfloat16))
    b_p = jnp.zeros((1, ne_pad), jnp.float32).at[:, :ne].set(
        jnp.transpose(bias).astype(jnp.float32))

    grid = (B_pad // tile_b_eff, K_pad // tile_k_eff)

    cost = pl.CostEstimate(
        flops=2 * B * ne * K,
        transcendentals=0,
        bytes_accessed=2 * (B * K + K * ne) + 4 * (B * ne + ne),
    )

    out = pl.pallas_call(
        ei_dense_kernel,
        out_shape=jax.ShapeDtypeStruct((B_pad, ne_pad), jnp.float32),
        grid_spec=pltpu.PrefetchScalarGridSpec(
            num_scalar_prefetch=0,
            grid=grid,
            in_specs=[
                pl.BlockSpec((tile_b_eff, tile_k_eff), lambda i, k: (i, k)),  # x
                pl.BlockSpec((tile_k_eff, ne_pad), lambda i, k: (k, 0)),      # W.T
                pl.BlockSpec((1, ne_pad), lambda i, k: (0, 0)),               # bias
            ],
            out_specs=pl.BlockSpec((tile_b_eff, ne_pad), lambda i, k: (i, 0)),
            scratch_shapes=[pltpu.VMEM((tile_b_eff, ne_pad), jnp.float32)],
        ),
        compiler_params=pltpu.CompilerParams(
            dimension_semantics=("parallel", "arbitrary"),
            vmem_limit_bytes=64 * 1024 * 1024,
        ),
        cost_estimate=cost,
    )(x_p, w_p, b_p)

    return out[:B, :ne]


# --------------------------- parameter init ----------------------------------

def init_ei_dense_params(key, n_input, ne, ni, numerator=2, k=1):
    """Matches EiDenseLayer.init_weights (lognormal branch) + zero bias."""
    target_std = np.sqrt(numerator * ne / (n_input * (ne - 1)))
    mean = target_std * k
    var = target_std ** 2
    mu = np.log(mean ** 2 / np.sqrt(mean ** 2 + var))
    sigma = np.sqrt(np.log(1.0 + var / mean ** 2))

    k_ex, k_ei = jax.random.split(key)
    Wex = jnp.exp(mu + sigma * jax.random.normal(k_ex, (ne, n_input), jnp.float32))
    Wei = jnp.exp(mu + sigma * jax.random.normal(k_ei, (ne, ni), jnp.float32))
    Wei = Wei / Wei.sum(axis=1, keepdims=True)               # rows sum to 1
    Wix = jnp.ones((ni, 1), jnp.float32) * Wex.mean(axis=0, keepdims=True)
    bias = jnp.zeros((ne, 1), jnp.float32)
    return Wex, Wix, Wei, bias


# ------------------------------- main ----------------------------------------

if __name__ == "__main__":
    # Small shapes consistent with the module: batch=16, n_input=32, ne=16,
    # ni = int(0.1 * ne) = 1 (minimum of 1 inhibitory unit).
    B, n_input, ne = 16, 32, 16
    ni = max(1, int(ne * 0.1))

    key = jax.random.PRNGKey(0)
    kx, kw = jax.random.split(key)

    x = jax.random.normal(kx, (B, n_input), dtype=jnp.float32)
    Wex, Wix, Wei, bias = init_ei_dense_params(kw, n_input, ne, ni)

    h = ei_dense_forward(x, Wex, Wix, Wei, bias)
    h = jax.block_until_ready(h)

    # Pure-JAX f32 reference (same semantics as the torch EiDenseLayer forward).
    W_ref = Wex - Wei @ Wix
    h_ref = x @ W_ref.T + bias.T
    # bf16 matmul inputs with f32 accumulation -> relaxed tolerance.
    np.testing.assert_allclose(np.asarray(h), np.asarray(h_ref),
                               rtol=2e-2, atol=2e-2)

    # TODO(synk): EiDenseWithShunt's own shunting forward (alpha/gamma/g scaling)
    # raises NotImplementedError in the source and references undefined params,
    # so only the inherited EiDenseLayer forward is implemented here.
    # TODO(synk): gradient_alignment / output_alignment are autograd-time
    # diagnostics (torch.is_grad_enabled()) and are not part of the inference
    # forward pass, so they are intentionally not implemented in the kernel.

    print("KERNEL_OK")
</pallas_src>

<mosaic_0001>
module attributes {stable_mosaic.version = 11 : i64} {
  func.func @ei_dense_kernel(%arg0: i32, %arg1: i32, %arg2: memref<128x32xbf16, #tpu.memory_space<vmem>>, %arg3: memref<32x128xbf16, #tpu.memory_space<vmem>>, %arg4: memref<1x128xf32, #tpu.memory_space<vmem>>, %arg5: memref<128x128xf32, #tpu.memory_space<vmem>>, %arg6: memref<128x128xf32, #tpu.memory_space<vmem>>) attributes {dimension_semantics = [#tpu.dimension_semantics<parallel>, #tpu.dimension_semantics<arbitrary>], iteration_bounds = array<i64: 1, 1>, scalar_prefetch = 0 : i64, scratch_operands = 1 : i64, tpu.core_type = #tpu.core_type<tc>, window_params = [{transform_indices = @transform_0, window_bounds = array<i64: 128, 32>}, {transform_indices = @transform_1, window_bounds = array<i64: 32, 128>}, {pipeline_mode = #tpu.pipeline_mode<synchronous>, transform_indices = @transform_2, window_bounds = array<i64: 1, 128>}, {transform_indices = @transform_3, window_bounds = array<i64: 128, 128>}]} {
    %c0_i32 = arith.constant 0 : i32
    %0 = arith.cmpi eq, %arg1, %c0_i32 : i32
    %1 = arith.extui %0 : i1 to i32
    %c0_i32_0 = arith.constant 0 : i32
    %2 = arith.cmpi ne, %1, %c0_i32_0 : i32
    scf.if %2 {
      %cst_10 = arith.constant 0.000000e+00 : f32
      %12 = vector.broadcast %cst_10 : f32 to vector<128x128xf32>
      %c0_11 = arith.constant 0 : index
      %c0_12 = arith.constant 0 : index
      %13 = vector.load %arg6[%c0_11, %c0_12] : memref<128x128xf32, #tpu.memory_space<vmem>>, vector<128x128xf32>
      tpu.vector_store %arg6[%c0_11, %c0_12], %12 {strides = array<i32>} : memref<128x128xf32, #tpu.memory_space<vmem>>, vector<128x128xf32>,
    } else {
    }
    %c0 = arith.constant 0 : index
    %c0_1 = arith.constant 0 : index
    %3 = vector.load %arg6[%c0, %c0_1] : memref<128x128xf32, #tpu.memory_space<vmem>>, vector<128x128xf32>
    %c0_2 = arith.constant 0 : index
    %c0_3 = arith.constant 0 : index
    %4 = vector.load %arg2[%c0_2, %c0_3] : memref<128x32xbf16, #tpu.memory_space<vmem>>, vector<128x32xbf16>
    %c0_4 = arith.constant 0 : index
    %c0_5 = arith.constant 0 : index
    %5 = vector.load %arg3[%c0_4, %c0_5] : memref<32x128xbf16, #tpu.memory_space<vmem>>, vector<32x128xbf16>
    %cst = arith.constant dense<0.000000e+00> : vector<128x128xf32>
    %6 = tpu.matmul %4, %5, %cst {dimension_numbers = #tpu.dot_dimension_numbers<[1], [0], [0], [1], [0, 0, 1, 1], [], []>} : vector<128x32xbf16>, vector<32x128xbf16>, vector<128x128xf32> -> vector<128x128xf32>
    %7 = arith.addf %3, %6 : vector<128x128xf32>
    %c0_6 = arith.constant 0 : index
    %c0_7 = arith.constant 0 : index
    %8 = vector.load %arg6[%c0_6, %c0_7] : memref<128x128xf32, #tpu.memory_space<vmem>>, vector<128x128xf32>
    tpu.vector_store %arg6[%c0_6, %c0_7], %7 {strides = array<i32>} : memref<128x128xf32, #tpu.memory_space<vmem>>, vector<128x128xf32>,
    %c0_i32_8 = arith.constant 0 : i32
    %9 = arith.cmpi eq, %arg1, %c0_i32_8 : i32
    %10 = arith.extui %9 : i1 to i32
    %c0_i32_9 = arith.constant 0 : i32
    %11 = arith.cmpi ne, %10, %c0_i32_9 : i32
    scf.if %11 {
      %c0_10 = arith.constant 0 : index
      %c0_11 = arith.constant 0 : index
      %12 = vector.load %arg6[%c0_10, %c0_11] : memref<128x128xf32, #tpu.memory_space<vmem>>, vector<128x128xf32>
      %c0_12 = arith.constant 0 : index
      %c0_13 = arith.constant 0 : index
      %13 = vector.load %arg4[%c0_12, %c0_13] : memref<1x128xf32, #tpu.memory_space<vmem>>, vector<1x128xf32>
      %14 = vector.broadcast %13 : vector<1x128xf32> to vector<128x128xf32>
      %15 = arith.addf %12, %14 : vector<128x128xf32>
      %c0_14 = arith.constant 0 : index
      %c0_15 = arith.constant 0 : index
      %16 = vector.load %arg5[%c0_14, %c0_15] : memref<128x128xf32, #tpu.memory_space<vmem>>, vector<128x128xf32>
      tpu.vector_store %arg5[%c0_14, %c0_15], %15 {strides = array<i32>} : memref<128x128xf32, #tpu.memory_space<vmem>>, vector<128x128xf32>,
    } else {
    }
    return
  }
  func.func @transform_0(%arg0: i32, %arg1: i32) -> (i32, i32) {
    %c0_i32 = arith.constant 0 : i32
    return %arg0, %arg1 : i32, i32
  }
  func.func @transform_1(%arg0: i32, %arg1: i32) -> (i32, i32) {
    %c0_i32 = arith.constant 0 : i32
    %c0_i32_0 = arith.constant 0 : i32
    return %arg1, %c0_i32 : i32, i32
  }
  func.func @transform_2(%arg0: i32, %arg1: i32) -> (i32, i32) {
    %c0_i32 = arith.constant 0 : i32
    %c0_i32_0 = arith.constant 0 : i32
    %c0_i32_1 = arith.constant 0 : i32
    return %c0_i32, %c0_i32_0 : i32, i32
  }
  func.func @transform_3(%arg0: i32, %arg1: i32) -> (i32, i32) {
    %c0_i32 = arith.constant 0 : i32
    %c0_i32_0 = arith.constant 0 : i32
    return %arg0, %c0_i32 : i32, i32
  }
}

</mosaic_0001>

<llo_original>
// kernel: tpu_custom_call.1
$region0: #{tpu_custom_call.1}
  #allocation0 [shape = 'u32[]', space=smem, size = 0x4, offset = 0x4, fixed_abs, tag = 'smem constant byte address 0x4 - core index']
  #allocation1 [shape = 'u32[72,128]{1,0:T(1,128)}', space=vmem, size = 0x9000, scoped, tag = 'internal scratch']
  #allocation2 [shape = 'f32[128,128]{1,0:T(8,128)}', space=vmem, size = 0x10000, scoped, tag = 'scratch operand']
  %s0 = inlined_call_operand.vmem [shape: bf16[128,32], index: 0, kind: input, shape index: {}]
  %s1 = inlined_call_operand.vmem [shape: bf16[32,128], index: 1, kind: input, shape index: {}]
  %s2 = inlined_call_operand.vmem [shape: f32[1,128], index: 2, kind: input, shape index: {}]
  %s3 = inlined_call_operand.hbm [shape: f32[128,128], index: 3, kind: output, shape index: {}]
  %s4 = sld [smem:[#allocation0]]
  $region30: #{tpu_custom_call.1} parent=0
    _
  %s6 = ssub.s32 1, %s4
  %s7 = scalar_select 0, %s6, %s4
  $region1: #{tpu_custom_call.1} parent=0
    #allocation3 [shape = 'u8[65536]{0}', space=vmem, size = 0x10000, scoped, tag = 'output window, operand 0, single buffered']
    #allocation4 [shape = 's32[1]{0}', space=sflag, size = 0x4, scoped, tag = 'scoped memory for tpu_custom_call.1']
    %8 = vsyncpa [#allocation4], 0
    // Predicated region
    $region2: #{tpu_custom_call.1} parent=1 // pred_check
      _
    $region3: #{tpu_custom_call.1} parent=1 // pred_check_branch
      %10 = sbr.rel (0) target = $region5
    $region4: #{tpu_custom_call.1} parent=1 // pred_region
      _
    $region5: #{tpu_custom_call.1} parent=1 // pred_fallthru
      _
    // Predicated region
    $region6: #{tpu_custom_call.1} parent=1 // pred_check
      _
    $region7: #{tpu_custom_call.1} parent=1 // pred_check_branch
      %12 = sbr.rel (0) target = $region9
    $region8: #{tpu_custom_call.1} parent=1 // pred_region
      _
    $region9: #{tpu_custom_call.1} parent=1 // pred_fallthru
      _
    // Predicated region
    $region10: #{tpu_custom_call.1} parent=1 // pred_check
      _
    $region11: #{tpu_custom_call.1} parent=1 // pred_check_branch
      %14 = sbr.rel (0) target = $region13
    $region12: #{tpu_custom_call.1} parent=1 // pred_region
      _
    $region13: #{tpu_custom_call.1} parent=1 // pred_fallthru
      _
    %p16 = scmp.eq.s32.totalorder 0, 0
    // Predicated region
    $region14: #{tpu_custom_call.1} parent=1 // pred_check
      %p17 = pneg %p16
    $region15: #{tpu_custom_call.1} parent=1 // pred_check_branch
      %19 = sbr.rel (%p17) target = $region17
    $region16: #{tpu_custom_call.1} parent=1 // pred_region
      %20 = vst [vmem:[#allocation2] sm:$0xff] 0.0
      %21 = vst [vmem:[#allocation2 + $0x8] sm:$0xff] 0.0
      %22 = vst [vmem:[#allocation2 + $0x10] sm:$0xff] 0.0
      %23 = vst [vmem:[#allocation2 + $0x18] sm:$0xff] 0.0
      %24 = vst [vmem:[#allocation2 + $0x20] sm:$0xff] 0.0
      %25 = vst [vmem:[#allocation2 + $0x28] sm:$0xff] 0.0
      %26 = vst [vmem:[#allocation2 + $0x30] sm:$0xff] 0.0
      %27 = vst [vmem:[#allocation2 + $0x38] sm:$0xff] 0.0
      %28 = vst [vmem:[#allocation2 + $0x40] sm:$0xff] 0.0
      %29 = vst [vmem:[#allocation2 + $0x48] sm:$0xff] 0.0
      %30 = vst [vmem:[#allocation2 + $0x50] sm:$0xff] 0.0
      %31 = vst [vmem:[#allocation2 + $0x58] sm:$0xff] 0.0
      %32 = vst [vmem:[#allocation2 + $0x60] sm:$0xff] 0.0
      %33 = vst [vmem:[#allocation2 + $0x68] sm:$0xff] 0.0
      %34 = vst [vmem:[#allocation2 + $0x70] sm:$0xff] 0.0
      %35 = vst [vmem:[#allocation2 + $0x78] sm:$0xff] 0.0
    $region17: #{tpu_custom_call.1} parent=1 // pred_fallthru
      _
    %v36 = vld [vmem:[#allocation2] sm:$0xff]
    %v37 = vld [vmem:[#allocation2 + $0x8] sm:$0xff]
    %v38 = vld [vmem:[#allocation2 + $0x10] sm:$0xff]
    %v39 = vld [vmem:[#allocation2 + $0x18] sm:$0xff]
    %v40 = vld [vmem:[#allocation2 + $0x20] sm:$0xff]
    %v41 = vld [vmem:[#allocation2 + $0x28] sm:$0xff]
    %v42 = vld [vmem:[#allocation2 + $0x30] sm:$0xff]
    %v43 = vld [vmem:[#allocation2 + $0x38] sm:$0xff]
    %v44 = vld [vmem:[#allocation2 + $0x40] sm:$0xff]
    %v45 = vld [vmem:[#allocation2 + $0x48] sm:$0xff]
    %v46 = vld [vmem:[#allocation2 + $0x50] sm:$0xff]
    %v47 = vld [vmem:[#allocation2 + $0x58] sm:$0xff]
    %v48 = vld [vmem:[#allocation2 + $0x60] sm:$0xff]
    %v49 = vld [vmem:[#allocation2 + $0x68] sm:$0xff]
    %v50 = vld [vmem:[#allocation2 + $0x70] sm:$0xff]
    %v51 = vld [vmem:[#allocation2 + $0x78] sm:$0xff]
    %v52 = vld [vmem:[%s0] sm:$0xf]
    %v53 = vld [vmem:[%s0 + $0x4] sm:$0xf]
    %v54 = vld [vmem:[%s0 + $0x8] sm:$0xf]
    %v55 = vld [vmem:[%s0 + $0xc] sm:$0xf]
    %v56 = vld [vmem:[%s0 + $0x10] sm:$0xf]
    %v57 = vld [vmem:[%s0 + $0x14] sm:$0xf]
    %v58 = vld [vmem:[%s0 + $0x18] sm:$0xf]
    %v59 = vld [vmem:[%s0 + $0x1c] sm:$0xf]
    %v60 = vld [vmem:[%s0 + $0x20] sm:$0xf]
    %v61 = vld [vmem:[%s0 + $0x24] sm:$0xf]
    %v62 = vld [vmem:[%s0 + $0x28] sm:$0xf]
    %v63 = vld [vmem:[%s0 + $0x2c] sm:$0xf]
    %v64 = vld [vmem:[%s0 + $0x30] sm:$0xf]
    %v65 = vld [vmem:[%s0 + $0x34] sm:$0xf]
    %v66 = vld [vmem:[%s0 + $0x38] sm:$0xf]
    %v67 = vld [vmem:[%s0 + $0x3c] sm:$0xf]
    %v68 = vld [vmem:[%s1] sm:$0xf]
    %v69 = vld [vmem:[%s1 + $0x4] sm:$0xf]
    %v70 = vld [vmem:[%s1 + $0x8] sm:$0xf]
    %v71 = vld [vmem:[%s1 + $0xc] sm:$0xf]
    %v88 = vunpack.c.l.b16 %v52
    %v89 = vunpack.c.l.b16 %v53
    %v90 = vunpack.c.l.b16 %v54
    %v91 = vunpack.c.l.b16 %v55
    %v92 = vunpack.c.l.b16 %v56
    %v93 = vunpack.c.l.b16 %v57
    %v94 = vunpack.c.l.b16 %v58
    %v95 = vunpack.c.l.b16 %v59
    %v96 = vunpack.c.l.b16 %v60
    %v97 = vunpack.c.l.b16 %v61
    %v98 = vunpack.c.l.b16 %v62
    %v99 = vunpack.c.l.b16 %v63
    %v100 = vunpack.c.l.b16 %v64
    %v101 = vunpack.c.l.b16 %v65
    %v102 = vunpack.c.l.b16 %v66
    %v103 = vunpack.c.l.b16 %v67
    %v104 = vpack.c.b16 %v89, %v88
    %v105 = vpack.c.b16 %v91, %v90
    %v106 = vpack.c.b16 %v93, %v92
    %v107 = vpack.c.b16 %v95, %v94
    %v108 = vpack.c.b16 %v97, %v96
    %v109 = vpack.c.b16 %v99, %v98
    %v110 = vpack.c.b16 %v101, %v100
    %v111 = vpack.c.b16 %v103, %v102
    %v116 = vunpack.c.l.b16 %v68
    %v117 = vunpack.c.l.b16 %v69
    %v118 = vunpack.c.l.b16 %v70
    %v119 = vunpack.c.l.b16 %v71
    %v120 = vpack.c.b16 %v117, %v116
    %v121 = vpack.c.b16 %v119, %v118
    %vm124 = vcmask 261120
    %v126 = vsel %vm124, %v104, 0
    %v129 = vsel %vm124, %v105, 0
    %v132 = vsel %vm124, %v106, 0
    %v135 = vsel %vm124, %v107, 0
    %v138 = vsel %vm124, %v108, 0
    %v141 = vsel %vm124, %v109, 0
    %v144 = vsel %vm124, %v110, 0
    %v147 = vsel %vm124, %v111, 0
    %149 = vmatpush.bf16.msra.mxu0 0
    %150 = vmatpush.bf16.msra.mxu0 0
    %151 = vmatpush.bf16.msra.mxu0 0
    %152 = vmatpush.bf16.msra.mxu0 0
    %153 = vmatpush.bf16.msra.mxu0 0
    %154 = vmatpush.bf16.msra.mxu0 0
    %155 = vmatpush.bf16.msra.mxu0 %v121
    %156 = vmatpush.bf16.msra.mxu0 %v120
    %157 = vmatmul.bf16.gmra.mxu0 %v126
    %v158 = vpop.f32.mrf.mxu0
    %v159 = vadd.f32 0.0, %v158
    %v160 = vpop.f32.mrf.mxu0
    %v161 = vadd.f32 0.0, %v160
    %162 = vmatmul.bf16.gmra.mxu0 %v129
    %v163 = vpop.f32.mrf.mxu0
    %v164 = vadd.f32 0.0, %v163
    %v165 = vpop.f32.mrf.mxu0
    %v166 = vadd.f32 0.0, %v165
    %167 = vmatmul.bf16.gmra.mxu0 %v132
    %v168 = vpop.f32.mrf.mxu0
    %v169 = vadd.f32 0.0, %v168
    %v170 = vpop.f32.mrf.mxu0
    %v171 = vadd.f32 0.0, %v170
    %172 = vmatmul.bf16.gmra.mxu0 %v135
    %v173 = vpop.f32.mrf.mxu0
    %v174 = vadd.f32 0.0, %v173
    %v175 = vpop.f32.mrf.mxu0
    %v176 = vadd.f32 0.0, %v175
    %177 = vmatmul.bf16.gmra.mxu0 %v138
    %v178 = vpop.f32.mrf.mxu0
    %v179 = vadd.f32 0.0, %v178
    %v180 = vpop.f32.mrf.mxu0
    %v181 = vadd.f32 0.0, %v180
    %182 = vmatmul.bf16.gmra.mxu0 %v141
    %v183 = vpop.f32.mrf.mxu0
    %v184 = vadd.f32 0.0, %v183
    %v185 = vpop.f32.mrf.mxu0
    %v186 = vadd.f32 0.0, %v185
    %187 = vmatmul.bf16.gmra.mxu0 %v144
    %v188 = vpop.f32.mrf.mxu0
    %v189 = vadd.f32 0.0, %v188
    %v190 = vpop.f32.mrf.mxu0
    %v191 = vadd.f32 0.0, %v190
    %192 = vmatmul.bf16.gmra.mxu0 %v147
    %v193 = vpop.f32.mrf.mxu0
    %v194 = vadd.f32 0.0, %v193
    %v195 = vpop.f32.mrf.mxu0
    %v196 = vadd.f32 0.0, %v195
    %197 = vdwg.mxu0
    %v198 = vadd.f32 %v36, %v159
    %v199 = vadd.f32 %v37, %v161
    %v200 = vadd.f32 %v38, %v164
    %v201 = vadd.f32 %v39, %v166
    %v202 = vadd.f32 %v40, %v169
    %v203 = vadd.f32 %v41, %v171
    %v204 = vadd.f32 %v42, %v174
    %v205 = vadd.f32 %v43, %v176
    %v206 = vadd.f32 %v44, %v179
    %v207 = vadd.f32 %v45, %v181
    %v208 = vadd.f32 %v46, %v184
    %v209 = vadd.f32 %v47, %v186
    %v210 = vadd.f32 %v48, %v189
    %v211 = vadd.f32 %v49, %v191
    %v212 = vadd.f32 %v50, %v194
    %v213 = vadd.f32 %v51, %v196
    %214 = vst [vmem:[#allocation2] sm:$0xff] %v198
    %215 = vst [vmem:[#allocation2 + $0x8] sm:$0xff] %v199
    %216 = vst [vmem:[#allocation2 + $0x10] sm:$0xff] %v200
    %217 = vst [vmem:[#allocation2 + $0x18] sm:$0xff] %v201
    %218 = vst [vmem:[#allocation2 + $0x20] sm:$0xff] %v202
    %219 = vst [vmem:[#allocation2 + $0x28] sm:$0xff] %v203
    %220 = vst [vmem:[#allocation2 + $0x30] sm:$0xff] %v204
    %221 = vst [vmem:[#allocation2 + $0x38] sm:$0xff] %v205
    %222 = vst [vmem:[#allocation2 + $0x40] sm:$0xff] %v206
    %223 = vst [vmem:[#allocation2 + $0x48] sm:$0xff] %v207
    %224 = vst [vmem:[#allocation2 + $0x50] sm:$0xff] %v208
    %225 = vst [vmem:[#allocation2 + $0x58] sm:$0xff] %v209
    %226 = vst [vmem:[#allocation2 + $0x60] sm:$0xff] %v210
    %227 = vst [vmem:[#allocation2 + $0x68] sm:$0xff] %v211
    %228 = vst [vmem:[#allocation2 + $0x70] sm:$0xff] %v212
    %229 = vst [vmem:[#allocation2 + $0x78] sm:$0xff] %v213
    // Predicated region
    $region18: #{tpu_custom_call.1} parent=1 // pred_check
      %p230 = pneg %p16
    $region19: #{tpu_custom_call.1} parent=1 // pred_check_branch
      %232 = sbr.rel (%p230) target = $region21
    $region20: #{tpu_custom_call.1} parent=1 // pred_region
      %v233 = vld [vmem:[#allocation2] sm:$0xff]
      %v234 = vld [vmem:[#allocation2 + $0x8] sm:$0xff]
      %v235 = vld [vmem:[#allocation2 + $0x10] sm:$0xff]
      %v236 = vld [vmem:[#allocation2 + $0x18] sm:$0xff]
      %v237 = vld [vmem:[#allocation2 + $0x20] sm:$0xff]
      %v238 = vld [vmem:[#allocation2 + $0x28] sm:$0xff]
      %v239 = vld [vmem:[#allocation2 + $0x30] sm:$0xff]
      %v240 = vld [vmem:[#allocation2 + $0x38] sm:$0xff]
      %v241 = vld [vmem:[#allocation2 + $0x40] sm:$0xff]
      %v242 = vld [vmem:[#allocation2 + $0x48] sm:$0xff]
      %v243 = vld [vmem:[#allocation2 + $0x50] sm:$0xff]
      %v244 = vld [vmem:[#allocation2 + $0x58] sm:$0xff]
      %v245 = vld [vmem:[#allocation2 + $0x60] sm:$0xff]
      %v246 = vld [vmem:[#allocation2 + $0x68] sm:$0xff]
      %v247 = vld [vmem:[#allocation2 + $0x70] sm:$0xff]
      %v248 = vld [vmem:[#allocation2 + $0x78] sm:$0xff]
      %v249 = vld [vmem:[%s2] sm:$0x1]
      %v251 = vperm.slane %v249, 0
      %v253 = vadd.f32 %v233, %v251
      %v254 = vadd.f32 %v234, %v251
      %v255 = vadd.f32 %v235, %v251
      %v256 = vadd.f32 %v236, %v251
      %v257 = vadd.f32 %v237, %v251
      %v258 = vadd.f32 %v238, %v251
      %v259 = vadd.f32 %v239, %v251
      %v260 = vadd.f32 %v240, %v251
      %v261 = vadd.f32 %v241, %v251
      %v262 = vadd.f32 %v242, %v251
      %v263 = vadd.f32 %v243, %v251
      %v264 = vadd.f32 %v244, %v251
      %v265 = vadd.f32 %v245, %v251
      %v266 = vadd.f32 %v246, %v251
      %v267 = vadd.f32 %v247, %v251
      %v268 = vadd.f32 %v248, %v251
      %269 = vst [vmem:[#allocation3] sm:$0xff] %v253
      %270 = vst [vmem:[#allocation3 + $0x8] sm:$0xff] %v254
      %271 = vst [vmem:[#allocation3 + $0x10] sm:$0xff] %v255
      %272 = vst [vmem:[#allocation3 + $0x18] sm:$0xff] %v256
      %273 = vst [vmem:[#allocation3 + $0x20] sm:$0xff] %v257
      %274 = vst [vmem:[#allocation3 + $0x28] sm:$0xff] %v258
      %275 = vst [vmem:[#allocation3 + $0x30] sm:$0xff] %v259
      %276 = vst [vmem:[#allocation3 + $0x38] sm:$0xff] %v260
      %277 = vst [vmem:[#allocation3 + $0x40] sm:$0xff] %v261
      %278 = vst [vmem:[#allocation3 + $0x48] sm:$0xff] %v262
      %279 = vst [vmem:[#allocation3 + $0x50] sm:$0xff] %v263
      %280 = vst [vmem:[#allocation3 + $0x58] sm:$0xff] %v264
      %281 = vst [vmem:[#allocation3 + $0x60] sm:$0xff] %v265
      %282 = vst [vmem:[#allocation3 + $0x68] sm:$0xff] %v266
      %283 = vst [vmem:[#allocation3 + $0x70] sm:$0xff] %v267
      %284 = vst [vmem:[#allocation3 + $0x78] sm:$0xff] %v268
    $region21: #{tpu_custom_call.1} parent=1 // pred_fallthru
      _
    // Predicated region
    $region22: #{tpu_custom_call.1} parent=1 // pred_check
      _
    $region23: #{tpu_custom_call.1} parent=1 // pred_check_branch
      %286 = sbr.rel (0) target = $region25
    $region24: #{tpu_custom_call.1} parent=1 // pred_region
      %288 = vsyncadd [#allocation4], 0
      %s289 = sshll.u32 [#allocation3], 4
      %s290 = int_to_ptr.vmem [resolvable:$true] %s289
      %s291 = sshll.u32 %s3, 4
      %s292 = int_to_ptr.hbm [resolvable:$true] %s291
      %297 = dma.vmem_to_hbm [thread:$0]  %s290, 2048, %s292, [#allocation4], 128, 128, 8
    $region25: #{tpu_custom_call.1} parent=1 // pred_fallthru
      _
    // Predicated region
    $region26: #{tpu_custom_call.1} parent=1 // pred_check
      _
    $region27: #{tpu_custom_call.1} parent=1 // pred_check_branch
      %299 = sbr.rel (0) target = $region29
    $region28: #{tpu_custom_call.1} parent=1 // pred_region
      %301 = dma.done [#allocation4], 2048
    $region29: #{tpu_custom_call.1} parent=1 // pred_fallthru
      _
    %302 = vsyncpa [#allocation4], 1

</llo_original>
